<compile_context>
chip_gen: v5e
topology: v5e:2x2
jax: 0.10.0
libtpu: 0.0.40
codegen_flags: <defaults>
</compile_context>

<pallas_src>
import functools
import math

import jax
import jax.numpy as jnp
from jax.experimental import pallas as pl
from jax.experimental.pallas import tpu as pltpu

LANES = 128
SUBLANES = 8


def _round_up(x, m):
    return ((x + m - 1) // m) * m


def _default_n_parallel():
    """2 on chips with 2 TensorCores per Pallas device (v7x-class), else 1."""
    try:
        kind = jax.devices()[0].device_kind.lower()
    except Exception:
        return 1
    one_tc = ("v5e", "v5 lite", "v5lite", "v6e", "v6 lite", "v6lite")
    return 1 if any(m in kind for m in one_tc) else 2


def _gyro_loss_kernel(p_ref, t_ref, acc_ref, *, w, epsilon, C, n_k,
                      full_rows, last_len):
    """One (tile_rows, 128) tile folded into the resident (8, 128) accumulator."""
    tile_rows = p_ref.shape[0]
    i = pl.program_id(0)
    k = pl.program_id(1)

    @pl.when(k == 0)
    def _init():
        acc_ref[...] = jnp.zeros_like(acc_ref)

    x = p_ref[...].astype(jnp.float32) - t_ref[...].astype(jnp.float32)
    a = jnp.abs(x)
    vals = jnp.where(a < epsilon, w * x * x, a + C)

    def fold(v):
        if tile_rows == SUBLANES:
            return v
        # (tile_rows, 128) -> (tile_rows//8, 8, 128) keeps the (8,128) tile
        # layout; the axis-0 sum is plain elementwise vreg adds (VPU, no XLU).
        return jnp.sum(v.reshape(-1, SUBLANES, LANES), axis=0)

    # Logical (un-clamped) first row of this block in the flat input.
    block_row0 = (i * n_k + k) * tile_rows

    @pl.when(block_row0 + tile_rows <= full_rows)
    def _interior_block():
        acc_ref[...] += fold(vals)

    @pl.when(block_row0 + tile_rows > full_rows)
    def _boundary_block():
        # Mask rows past the end and (if n % 128 != 0) lanes past the ragged
        # last row.  Out-of-range rows may contain stale VMEM garbage, so use
        # a select (not a multiply) to avoid NaN/Inf propagation.
        row = block_row0 + jax.lax.broadcasted_iota(jnp.int32, (tile_rows, 1), 0)
        col = jax.lax.broadcasted_iota(jnp.int32, (1, LANES), 1)
        mask = (row < full_rows) | ((row == full_rows) & (col < last_len))
        acc_ref[...] += fold(jnp.where(mask, vals, 0.0))


def gyro_loss(predictions, targets, *, w, epsilon,
              tile_bytes=4 << 20, n_parallel=None):
    """Pallas implementation of GyroLoss.forward; returns a scalar f32."""
    assert predictions.shape == targets.shape
    w = float(w)
    epsilon = float(epsilon)
    C = w * epsilon * epsilon - epsilon

    n = math.prod(predictions.shape)
    assert n > 0

    if n_parallel is None:
        n_parallel = _default_n_parallel()
    n_parallel = max(1, int(n_parallel))

    pred_f = predictions.reshape(-1)
    targ_f = targets.reshape(-1)

    full_rows, last_len = divmod(n, LANES)
    rows = full_rows + (1 if last_len else 0)
    if last_len:
        # Ragged lane tail: pad by < 128 elements so the flat array reshapes
        # to (rows, 128).  The padded lanes are masked inside the kernel, so
        # correctness never depends on the pad value (or on epsilon > 0).
        # The common n % 128 == 0 case above is a zero-copy reshape.
        pad = LANES - last_len
        pred_f = jnp.pad(pred_f, (0, pad))
        targ_f = jnp.pad(targ_f, (0, pad))
    pred2d = pred_f.reshape(rows, LANES)
    targ2d = targ_f.reshape(rows, LANES)

    # Bytes-based tile sizing: ~tile_bytes per input per pipeline buffer
    # (8192 rows for f32, 16384 for bf16 at the 4 MiB default), shrunk for
    # small inputs so each core gets at most one (partial) block.
    itemsize = max(pred2d.dtype.itemsize, targ2d.dtype.itemsize)
    tile_rows = max(SUBLANES,
                    (int(tile_bytes) // (LANES * itemsize)) // SUBLANES * SUBLANES)
    tile_rows = min(tile_rows, _round_up(pl.cdiv(rows, n_parallel), SUBLANES))
    assert tile_rows % SUBLANES == 0

    n_k = pl.cdiv(rows, n_parallel * tile_rows)
    num_row_blocks = pl.cdiv(rows, tile_rows)

    def row_block_map(i, k):
        # With n_parallel > 1 the trailing logical blocks of the last core can
        # lie entirely past `rows`; clamp them onto the last real block (the
        # in-kernel mask zeroes their contribution).
        return (jnp.minimum(i * n_k + k, num_row_blocks - 1), 0)

    kernel = functools.partial(
        _gyro_loss_kernel, w=w, epsilon=epsilon, C=C,
        n_k=n_k, full_rows=full_rows, last_len=last_len)

    out_rows = n_parallel * SUBLANES
    in_bytes = n * (predictions.dtype.itemsize + targets.dtype.itemsize)
    out_bytes = out_rows * LANES * 4
    # 2 inputs x 2 pipeline buffers x tile, plus accumulator/output + slack.
    # >= 32 MiB lifts v5e's 16 MiB scoped default; stays under v7x's 64 MiB.
    vmem_limit = max(32 << 20, 4 * tile_rows * LANES * itemsize + (4 << 20))

    # NOTE(v7x): the size-n_parallel "parallel" axis is intended to shard
    # across both TensorCores; if profiling shows a single TC streaming,
    # switch that axis to pltpu.CORE_PARALLEL.
    partials = pl.pallas_call(
        kernel,
        out_shape=jax.ShapeDtypeStruct((out_rows, LANES), jnp.float32),
        grid=(n_parallel, n_k),
        in_specs=[
            pl.BlockSpec((tile_rows, LANES), row_block_map),
            pl.BlockSpec((tile_rows, LANES), row_block_map),
        ],
        out_specs=pl.BlockSpec((SUBLANES, LANES), lambda i, k: (i, 0)),
        compiler_params=pltpu.CompilerParams(
            dimension_semantics=("parallel", "arbitrary"),
            vmem_limit_bytes=vmem_limit),
        cost_estimate=pl.CostEstimate(
            flops=7 * n,
            transcendentals=0,
            bytes_accessed=in_bytes + out_bytes),
    )(pred2d, targ2d)

    # Single tiny cross-lane reduce + 1/n scale outside the kernel.
    return jnp.sum(partials) * (1.0 / n)


def gyro_loss_ref(predictions, targets, *, w, epsilon):
    C = w * epsilon * epsilon - epsilon
    x = predictions.astype(jnp.float32) - targets.astype(jnp.float32)
    t = jnp.abs(x)
    return jnp.mean(jnp.where(t < epsilon, w * x * x, t + C))


if __name__ == "__main__":
    # Module "parameters" (constructor args), fixed deterministically.
    w = 10.0
    epsilon = 2.0

    key = jax.random.PRNGKey(0)

    # (shape, dtype, gyro_loss kwargs, tolerance)
    cases = [
        ((2, 64, 2), jnp.float32, {}, 1e-5),           # n=256: zero-copy path, row-mask boundary
        ((2, 8, 2), jnp.float32, {}, 1e-5),            # n=32: ragged lane tail (<128)
        ((3, 7, 2), jnp.float32, {}, 1e-5),            # n=42: odd sizes, ragged tail
        ((64, 128, 2), jnp.float32,                    # n=16384: multi-step reduction axis
         dict(tile_bytes=32 * LANES * 4, n_parallel=2), 1e-4),
        ((48, 128, 2), jnp.float32,                    # n=12288: clamped fully-out-of-range block
         dict(tile_bytes=32 * LANES * 4, n_parallel=2), 1e-4),
        ((2, 64, 2), jnp.bfloat16, {}, 1e-4),          # bf16 inputs, in-kernel f32 cast
    ]

    for idx, (shape, dtype, kwargs, tol) in enumerate(cases):
        k1, k2 = jax.random.split(jax.random.fold_in(key, idx))
        predictions = (jax.random.normal(k1, shape, dtype=jnp.float32) * 3.0).astype(dtype)
        targets = (jax.random.normal(k2, shape, dtype=jnp.float32) * 3.0).astype(dtype)

        loss = gyro_loss(predictions, targets, w=w, epsilon=epsilon, **kwargs)
        loss = jax.block_until_ready(loss)

        ref = gyro_loss_ref(predictions, targets, w=w, epsilon=epsilon)
        assert jnp.allclose(loss, ref, rtol=tol, atol=tol), (shape, dtype, loss, ref)

    print("KERNEL_OK")
</pallas_src>

<mosaic_0001>
module attributes {stable_mosaic.version = 11 : i64} {
  func.func @_gyro_loss_kernel(%arg0: i32, %arg1: i32, %arg2: memref<8x128xf32, #tpu.memory_space<vmem>>, %arg3: memref<8x128xf32, #tpu.memory_space<vmem>>, %arg4: memref<8x128xf32, #tpu.memory_space<vmem>>) attributes {dimension_semantics = [#tpu.dimension_semantics<parallel>, #tpu.dimension_semantics<arbitrary>], iteration_bounds = array<i64: 2, 1>, scalar_prefetch = 0 : i64, scratch_operands = 0 : i64, tpu.core_type = #tpu.core_type<tc>, window_params = [{transform_indices = @transform_0, window_bounds = array<i64: 8, 128>}, {transform_indices = @transform_1, window_bounds = array<i64: 8, 128>}, {transform_indices = @transform_2, window_bounds = array<i64: 8, 128>}]} {
    %c0_i32 = arith.constant 0 : i32
    %0 = arith.cmpi eq, %arg1, %c0_i32 : i32
    %1 = arith.extui %0 : i1 to i32
    %c0_i32_0 = arith.constant 0 : i32
    %2 = arith.cmpi ne, %1, %c0_i32_0 : i32
    scf.if %2 {
      %cst_11 = arith.constant 0.000000e+00 : f32
      %26 = vector.broadcast %cst_11 : f32 to vector<8x128xf32>
      %c0_12 = arith.constant 0 : index
      %c0_13 = arith.constant 0 : index
      %27 = vector.load %arg4[%c0_12, %c0_13] : memref<8x128xf32, #tpu.memory_space<vmem>>, vector<8x128xf32>
      tpu.vector_store %arg4[%c0_12, %c0_13], %26 {strides = array<i32>} : memref<8x128xf32, #tpu.memory_space<vmem>>, vector<8x128xf32>,
    } else {
    }
    %c0 = arith.constant 0 : index
    %c0_1 = arith.constant 0 : index
    %3 = vector.load %arg2[%c0, %c0_1] : memref<8x128xf32, #tpu.memory_space<vmem>>, vector<8x128xf32>
    %c0_2 = arith.constant 0 : index
    %c0_3 = arith.constant 0 : index
    %4 = vector.load %arg3[%c0_2, %c0_3] : memref<8x128xf32, #tpu.memory_space<vmem>>, vector<8x128xf32>
    %5 = arith.subf %3, %4 : vector<8x128xf32>
    %6 = math.absf %5 : vector<8x128xf32>
    %cst = arith.constant 2.000000e+00 : f32
    %7 = vector.broadcast %cst : f32 to vector<8x128xf32>
    %8 = arith.cmpf olt, %6, %7 : vector<8x128xf32>
    %cst_4 = arith.constant 1.000000e+01 : f32
    %9 = vector.broadcast %cst_4 : f32 to vector<8x128xf32>
    %10 = arith.mulf %9, %5 : vector<8x128xf32>
    %11 = arith.mulf %10, %5 : vector<8x128xf32>
    %cst_5 = arith.constant 3.800000e+01 : f32
    %12 = vector.broadcast %cst_5 : f32 to vector<8x128xf32>
    %13 = arith.addf %6, %12 : vector<8x128xf32>
    %14 = arith.select %8, %11, %13 : vector<8x128xi1>, vector<8x128xf32>
    %c1_i32 = arith.constant 1 : i32
    %15 = arith.muli %arg0, %c1_i32 : i32
    %16 = arith.addi %15, %arg1 : i32
    %c8_i32 = arith.constant 8 : i32
    %17 = arith.muli %16, %c8_i32 : i32
    %c8_i32_6 = arith.constant 8 : i32
    %18 = arith.addi %17, %c8_i32_6 : i32
    %c2_i32 = arith.constant 2 : i32
    %19 = arith.cmpi sle, %18, %c2_i32 : i32
    %20 = arith.extui %19 : i1 to i32
    %c0_i32_7 = arith.constant 0 : i32
    %21 = arith.cmpi ne, %20, %c0_i32_7 : i32
    scf.if %21 {
      %c0_11 = arith.constant 0 : index
      %c0_12 = arith.constant 0 : index
      %26 = vector.load %arg4[%c0_11, %c0_12] : memref<8x128xf32, #tpu.memory_space<vmem>>, vector<8x128xf32>
      %27 = arith.addf %26, %14 : vector<8x128xf32>
      %c0_13 = arith.constant 0 : index
      %c0_14 = arith.constant 0 : index
      %28 = vector.load %arg4[%c0_13, %c0_14] : memref<8x128xf32, #tpu.memory_space<vmem>>, vector<8x128xf32>
      tpu.vector_store %arg4[%c0_13, %c0_14], %27 {strides = array<i32>} : memref<8x128xf32, #tpu.memory_space<vmem>>, vector<8x128xf32>,
    } else {
    }
    %c8_i32_8 = arith.constant 8 : i32
    %22 = arith.addi %17, %c8_i32_8 : i32
    %c2_i32_9 = arith.constant 2 : i32
    %23 = arith.cmpi sgt, %22, %c2_i32_9 : i32
    %24 = arith.extui %23 : i1 to i32
    %c0_i32_10 = arith.constant 0 : i32
    %25 = arith.cmpi ne, %24, %c0_i32_10 : i32
    scf.if %25 {
      %26 = tpu.iota {dimensions = array<i32: 0>} : vector<8x1xi32>
      %27 = vector.broadcast %17 : i32 to vector<8x1xi32>
      %28 = arith.addi %27, %26 : vector<8x1xi32>
      %29 = tpu.iota {dimensions = array<i32: 1>} : vector<1x128xi32>
      %c2_i32_11 = arith.constant 2 : i32
      %30 = vector.broadcast %c2_i32_11 : i32 to vector<8x1xi32>
      %31 = arith.cmpi slt, %28, %30 : vector<8x1xi32>
      %c2_i32_12 = arith.constant 2 : i32
      %32 = vector.broadcast %c2_i32_12 : i32 to vector<8x1xi32>
      %33 = arith.cmpi eq, %28, %32 : vector<8x1xi32>
      %c0_i32_13 = arith.constant 0 : i32
      %34 = vector.broadcast %c0_i32_13 : i32 to vector<1x128xi32>
      %35 = arith.cmpi slt, %29, %34 : vector<1x128xi32>
      %36 = vector.broadcast %33 : vector<8x1xi1> to vector<8x128xi1>
      %37 = vector.broadcast %35 : vector<1x128xi1> to vector<8x128xi1>
      %38 = arith.andi %36, %37 : vector<8x128xi1>
      %39 = vector.broadcast %31 : vector<8x1xi1> to vector<8x128xi1>
      %40 = arith.ori %39, %38 : vector<8x128xi1>
      %c0_14 = arith.constant 0 : index
      %c0_15 = arith.constant 0 : index
      %41 = vector.load %arg4[%c0_14, %c0_15] : memref<8x128xf32, #tpu.memory_space<vmem>>, vector<8x128xf32>
      %cst_16 = arith.constant 0.000000e+00 : f32
      %42 = vector.broadcast %cst_16 : f32 to vector<8x128xf32>
      %43 = arith.select %40, %14, %42 : vector<8x128xi1>, vector<8x128xf32>
      %44 = arith.addf %41, %43 : vector<8x128xf32>
      %c0_17 = arith.constant 0 : index
      %c0_18 = arith.constant 0 : index
      %45 = vector.load %arg4[%c0_17, %c0_18] : memref<8x128xf32, #tpu.memory_space<vmem>>, vector<8x128xf32>
      tpu.vector_store %arg4[%c0_17, %c0_18], %44 {strides = array<i32>} : memref<8x128xf32, #tpu.memory_space<vmem>>, vector<8x128xf32>,
    } else {
    }
    return
  }
  func.func @transform_0(%arg0: i32, %arg1: i32) -> (i32, i32) {
    %c1_i32 = arith.constant 1 : i32
    %0 = arith.muli %arg0, %c1_i32 : i32
    %1 = arith.addi %0, %arg1 : i32
    %c0_i32 = arith.constant 0 : i32
    %2 = arith.minsi %1, %c0_i32 : i32
    %c0_i32_0 = arith.constant 0 : i32
    %c0_i32_1 = arith.constant 0 : i32
    return %2, %c0_i32_0 : i32, i32
  }
  func.func @transform_1(%arg0: i32, %arg1: i32) -> (i32, i32) {
    %c1_i32 = arith.constant 1 : i32
    %0 = arith.muli %arg0, %c1_i32 : i32
    %1 = arith.addi %0, %arg1 : i32
    %c0_i32 = arith.constant 0 : i32
    %2 = arith.minsi %1, %c0_i32 : i32
    %c0_i32_0 = arith.constant 0 : i32
    %c0_i32_1 = arith.constant 0 : i32
    return %2, %c0_i32_0 : i32, i32
  }
  func.func @transform_2(%arg0: i32, %arg1: i32) -> (i32, i32) {
    %c0_i32 = arith.constant 0 : i32
    %c0_i32_0 = arith.constant 0 : i32
    return %arg0, %c0_i32 : i32, i32
  }
}

</mosaic_0001>

<llo_original>
// kernel: tpu_custom_call.1
$region0: #{tpu_custom_call.1}
  #allocation0 [shape = 'u32[]', space=smem, size = 0x4, offset = 0x4, fixed_abs, tag = 'smem constant byte address 0x4 - core index']
  #allocation1 [shape = 'u32[72,128]{1,0:T(1,128)}', space=vmem, size = 0x9000, scoped, tag = 'internal scratch']
  %s0 = inlined_call_operand.hbm [shape: f32[2,128], index: 0, kind: input, shape index: {}]
  %s1 = inlined_call_operand.hbm [shape: f32[2,128], index: 1, kind: input, shape index: {}]
  %s2 = inlined_call_operand.hbm [shape: f32[16,128], index: 2, kind: output, shape index: {}]
  %s3 = sld [smem:[#allocation0]]
  $region61: #{tpu_custom_call.1} parent=0
    _
  %s5 = ssub.s32 1, %s3
  %s6 = scalar_select 0, %s5, %s3
  $region1: #{tpu_custom_call.1} parent=0
    #allocation2 [shape = 'u8[8192]{0}', space=vmem, size = 0x2000, scoped, tag = 'input window, operand 0']
    #allocation3 [shape = 's32[2]{0}', space=sflag, size = 0x8, scoped, tag = 'scoped memory for tpu_custom_call.1']
    #allocation4 [shape = 's32[2]{0}', space=sflag, size = 0x8, scoped, tag = 'scoped memory for tpu_custom_call.1']
    #allocation5 [shape = 'u8[8192]{0}', space=vmem, size = 0x2000, scoped, tag = 'input window, operand 1']
    #allocation6 [shape = 's32[2]{0}', space=sflag, size = 0x8, scoped, tag = 'scoped memory for tpu_custom_call.1']
    #allocation7 [shape = 'u8[8192]{0}', space=vmem, size = 0x2000, scoped, tag = 'output window, operand 0']
    %7 = vsyncpa [#allocation3], 0
    %s8 = scalar_lea.sflag [#allocation3], 1
    %9 = vsyncpa %s8, 0
    %10 = vsyncpa [#allocation6], 0
    %s11 = scalar_lea.sflag [#allocation6], 1
    %12 = vsyncpa %s11, 0
    %13 = vsyncpa [#allocation4], 0
    %s14 = scalar_lea.sflag [#allocation4], 1
    %15 = vsyncpa %s14, 0
    loop: start=0, step=1, limit=4
    $region2: #{tpu_custom_call.1} parent=1 // loop_pre_header
      _
    $region3: #{tpu_custom_call.1} parent=1 // loop_header
      %s17 = sphi 0, %s21
      %p18 = scmp.ge.s32.totalorder %s17, 4
      %s24 = sphi 0, %s36
      %s25 = sphi 0, %s32
      %s26 = sphi 0, %s24
      %s27 = sphi 0, %s25
      %s28 = sphi 0, %s26
      %s29 = sphi 0, %s27
      %s45 = sphi 0, %s47
      %s48 = sphi 0, %s45
      %s49 = sphi 0, %s48
      %s65 = sphi 0, %s49
      %s77 = sphi 0, %s79
      %s80 = sphi 0, %s77
      %s81 = sphi 0, %s80
      %s97 = sphi 0, %s81
      %s103 = sphi 0, %s105
      %s106 = sphi 0, %s103
      %s107 = sphi 0, %s106
      %s123 = sphi 0, %s107
    $region4: #{tpu_custom_call.1} parent=1 // loop_header_branch
      %20 = sbr.rel (%p18) target = $region8
    $region5: #{tpu_custom_call.1} parent=1 // loop_body
      %s22 = ssub.s32 %s17, 1
      %s23 = ssub.s32 %s17, 2
      %s30 = sadd.s32 1, %s25
      %p31 = scmp.ge.s32.totalorder %s30, 1
      %s32 = scalar_select %p31, 0, %s30
      %s33 = sadd.s32 1, %s24
      %s34 = scalar_select %p31, %s33, %s24
      %p35 = scmp.ge.s32.totalorder %s34, 2
      %s36 = scalar_select %p35, 0, %s34
      %s37 = sadd.s32 %s24, %s25
      %p38 = scmp.lt.s32.totalorder %s37, 0
      %s39 = scalar_select %p38, %s37, 0
      %s40 = sadd.s32 %s36, %s32
      %p41 = scmp.lt.s32.totalorder %s40, 0
      %s42 = scalar_select %p41, %s40, 0
      %s43 = ssub.s32 %s39, %s42
      %p44 = scmp.eq.s32.totalorder %s43, 0
      %s46 = sadd.s32 %s45, 1
      %s47 = scalar_select %p44, %s45, %s46
      %p50 = pneg %p44
      %p51 = scmp.eq.s32.totalorder %s17, 1
      %p52 = por %p50, %p51
      %p53 = scmp.ne.s32.totalorder %s45, %s48
      %p54 = scmp.eq.s32.totalorder %s17, 0
      %p55 = por %p53, %p54
      %p56 = scmp.ne.s32.totalorder %s45, %s48
      %p57 = scmp.eq.s32.totalorder %s22, 1
      %p58 = por %p56, %p57
      %p59 = scmp.ne.s32.totalorder %s48, %s49
      %p60 = scmp.eq.s32.totalorder %s22, 0
      %p61 = por %p59, %p60
      %p62 = scmp.ne.s32.totalorder %s48, %s49
      %p63 = scmp.eq.s32.totalorder %s23, 1
      %p64 = por %p62, %p63
      %p66 = scmp.ne.s32.totalorder %s49, %s65
      %p67 = scmp.eq.s32.totalorder %s23, 0
      %p68 = por %p66, %p67
      %s69 = sadd.s32 %s24, %s25
      %p70 = scmp.lt.s32.totalorder %s69, 0
      %s71 = scalar_select %p70, %s69, 0
      %s72 = sadd.s32 %s36, %s32
      %p73 = scmp.lt.s32.totalorder %s72, 0
      %s74 = scalar_select %p73, %s72, 0
      %s75 = ssub.s32 %s71, %s74
      %p76 = scmp.eq.s32.totalorder %s75, 0
      %s78 = sadd.s32 %s77, 1
      %s79 = scalar_select %p76, %s77, %s78
      %p82 = pneg %p76
      %p83 = scmp.eq.s32.totalorder %s17, 1
      %p84 = por %p82, %p83
      %p85 = scmp.ne.s32.totalorder %s77, %s80
      %p86 = scmp.eq.s32.totalorder %s17, 0
      %p87 = por %p85, %p86
      %p88 = scmp.ne.s32.totalorder %s77, %s80
      %p89 = scmp.eq.s32.totalorder %s22, 1
      %p90 = por %p88, %p89
      %p91 = scmp.ne.s32.totalorder %s80, %s81
      %p92 = scmp.eq.s32.totalorder %s22, 0
      %p93 = por %p91, %p92
      %p94 = scmp.ne.s32.totalorder %s80, %s81
      %p95 = scmp.eq.s32.totalorder %s23, 1
      %p96 = por %p94, %p95
      %p98 = scmp.ne.s32.totalorder %s81, %s97
      %p99 = scmp.eq.s32.totalorder %s23, 0
      %p100 = por %p98, %p99
      %s101 = ssub.s32 %s24, %s36
      %p102 = scmp.eq.s32.totalorder %s101, 0
      %s104 = sadd.s32 %s103, 1
      %s105 = scalar_select %p102, %s103, %s104
      %p108 = pneg %p102
      %p109 = scmp.eq.s32.totalorder %s17, 1
      %p110 = por %p108, %p109
      %p111 = scmp.ne.s32.totalorder %s103, %s106
      %p112 = scmp.eq.s32.totalorder %s17, 0
      %p113 = por %p111, %p112
      %p114 = scmp.ne.s32.totalorder %s103, %s106
      %p115 = scmp.eq.s32.totalorder %s22, 1
      %p116 = por %p114, %p115
      %p117 = scmp.ne.s32.totalorder %s106, %s107
      %p118 = scmp.eq.s32.totalorder %s22, 0
      %p119 = por %p117, %p118
      %p120 = scmp.ne.s32.totalorder %s106, %s107
      %p121 = scmp.eq.s32.totalorder %s23, 1
      %p122 = por %p120, %p121
      %p124 = scmp.ne.s32.totalorder %s107, %s123
      %p125 = scmp.eq.s32.totalorder %s23, 0
      %p126 = por %p124, %p125
      %p127 = scmp.le.s32.totalorder 1, %s17
      %p128 = scmp.lt.s32.totalorder %s17, 3
      %p129 = pnand %p127, %p128
      %p130 = pneg %p129
      // Predicated region
      $region9: #{tpu_custom_call.1} parent=5 // pred_check
        _
      $region10: #{tpu_custom_call.1} parent=5 // pred_check_branch
        %132 = sbr.rel (%p129) target = $region12
      $region11: #{tpu_custom_call.1} parent=5 // pred_region
        %s133 = ssub.s32 %s17, 1
      $region12: #{tpu_custom_call.1} parent=5 // pred_fallthru
        _
      %p134 = scmp.lt.s32.totalorder %s17, 2
      // Predicated region
      $region13: #{tpu_custom_call.1} parent=5 // pred_check
        %p135 = pneg %p134
      $region14: #{tpu_custom_call.1} parent=5 // pred_check_branch
        %137 = sbr.rel (%p135) target = $region16
      $region15: #{tpu_custom_call.1} parent=5 // pred_region
        // Predicated region
        $region17: #{tpu_custom_call.1} parent=15 // pred_check
          %p138 = pneg %p55
        $region18: #{tpu_custom_call.1} parent=15 // pred_check_branch
          %140 = sbr.rel (%p138) target = $region20
        $region19: #{tpu_custom_call.1} parent=15 // pred_region
          %s141 = sand.u32 %s45, 1
          %s142 = scalar_lea.sflag [#allocation3], %s141
          %s143 = sand.u32 %s45, 1
          %s144 = smul.addr %s143, 8
          %s145 = scalar_lea.vmem [#allocation2], %s144
          %s146 = sadd.s32 %s24, %s25
          %p147 = scmp.lt.s32.totalorder %s146, 0
          %s148 = scalar_select %p147, %s146, 0
          %s149 = smul.u32 4, %s148
          %s150 = ssub.s32 1, %s149
          %s151 = smul.u32 2, %s150
          %s152 = ssub.s32 8, %s151
          %s153 = sshll.u32 %s152, 4
          %154 = vsyncadd %s142, %s153
          %p155 = scmp.ne.s32.totalorder 0, %s151
          %s156 = smul.addr %s149, 2
          %s157 = scalar_lea.hbm %s0, %s156
          %s158 = smul.u32 2, %s150
          %s159 = sshll.u32 %s157, 4
          %s160 = int_to_ptr.hbm [resolvable:$true] %s159
          %s161 = sshll.u32 %s145, 4
          %s162 = int_to_ptr.vmem [resolvable:$true] %s161
          %s163 = sshll.u32 %s158, 4
          %167 = dma.hbm_to_vmem [thread:$0]  (%p155), %s160, %s163, %s162, %s142, 32, 32, 2
        $region20: #{tpu_custom_call.1} parent=15 // pred_fallthru
          _
        // Predicated region
        $region21: #{tpu_custom_call.1} parent=15 // pred_check
          %p168 = pneg %p87
        $region22: #{tpu_custom_call.1} parent=15 // pred_check_branch
          %170 = sbr.rel (%p168) target = $region24
        $region23: #{tpu_custom_call.1} parent=15 // pred_region
          %s171 = sand.u32 %s77, 1
          %s172 = scalar_lea.sflag [#allocation6], %s171
          %s173 = sand.u32 %s77, 1
          %s174 = smul.addr %s173, 8
          %s175 = scalar_lea.vmem [#allocation5], %s174
          %s176 = sadd.s32 %s24, %s25
          %p177 = scmp.lt.s32.totalorder %s176, 0
          %s178 = scalar_select %p177, %s176, 0
          %s179 = smul.u32 4, %s178
          %s180 = ssub.s32 1, %s179
          %s181 = smul.u32 2, %s180
          %s182 = ssub.s32 8, %s181
          %s183 = sshll.u32 %s182, 4
          %184 = vsyncadd %s172, %s183
          %p185 = scmp.ne.s32.totalorder 0, %s181
          %s186 = smul.addr %s179, 2
          %s187 = scalar_lea.hbm %s1, %s186
          %s188 = smul.u32 2, %s180
          %s189 = sshll.u32 %s187, 4
          %s190 = int_to_ptr.hbm [resolvable:$true] %s189
          %s191 = sshll.u32 %s175, 4
          %s192 = int_to_ptr.vmem [resolvable:$true] %s191
          %s193 = sshll.u32 %s188, 4
          %197 = dma.hbm_to_vmem [thread:$0]  (%p185), %s190, %s193, %s192, %s172, 32, 32, 2
        $region24: #{tpu_custom_call.1} parent=15 // pred_fallthru
          _
      $region16: #{tpu_custom_call.1} parent=5 // pred_fallthru
        _
      %p198 = scmp.le.s32.totalorder 1, %s17
      %p199 = scmp.lt.s32.totalorder %s17, 3
      %p200 = pnand %p198, %p199
      %p201 = pneg %p200
      // Predicated region
      $region25: #{tpu_custom_call.1} parent=5 // pred_check
        _
      $region26: #{tpu_custom_call.1} parent=5 // pred_check_branch
        %203 = sbr.rel (%p200) target = $region28
      $region27: #{tpu_custom_call.1} parent=5 // pred_region
        %s204 = ssub.s32 %s17, 1
        %s205 = sand.u32 %s48, 1
        %s206 = scalar_lea.sflag [#allocation3], %s205
        %s207 = sand.u32 %s48, 1
        %s208 = smul.addr %s207, 8
        %s209 = scalar_lea.vmem [#allocation2], %s208
        // Predicated region
        $region29: #{tpu_custom_call.1} parent=27 // pred_check
          %p210 = pneg %p61
        $region30: #{tpu_custom_call.1} parent=27 // pred_check_branch
          %212 = sbr.rel (%p210) target = $region32
        $region31: #{tpu_custom_call.1} parent=27 // pred_region
          %214 = dma.done %s206, 128
        $region32: #{tpu_custom_call.1} parent=27 // pred_fallthru
          _
        %s215 = sand.u32 %s80, 1
        %s216 = scalar_lea.sflag [#allocation6], %s215
        %s217 = sand.u32 %s80, 1
        %s218 = smul.addr %s217, 8
        %s219 = scalar_lea.vmem [#allocation5], %s218
        // Predicated region
        $region33: #{tpu_custom_call.1} parent=27 // pred_check
          %p220 = pneg %p93
        $region34: #{tpu_custom_call.1} parent=27 // pred_check_branch
          %222 = sbr.rel (%p220) target = $region36
        $region35: #{tpu_custom_call.1} parent=27 // pred_region
          %224 = dma.done %s216, 128
        $region36: #{tpu_custom_call.1} parent=27 // pred_fallthru
          _
        %s225 = sand.u32 %s48, 1
        %s226 = scalar_lea.sflag [#allocation3], %s225
        %s227 = sand.u32 %s48, 1
        %s228 = smul.addr %s227, 8
        %s229 = scalar_lea.vmem [#allocation2], %s228
        %p230 = pneg %p61
        %p231 = pneg %p58
        %s232 = sand.u32 %s80, 1
        %s233 = scalar_lea.sflag [#allocation6], %s232
        %s234 = sand.u32 %s80, 1
        %s235 = smul.addr %s234, 8
        %s236 = scalar_lea.vmem [#allocation5], %s235
        %p237 = pneg %p93
        %p238 = pneg %p90
        %p239 = pneg %p119
        %p240 = pneg %p116
        %s241 = sand.u32 %s106, 1
        %s242 = scalar_lea.sflag [#allocation4], %s241
        %s243 = sand.u32 %s106, 1
        %s244 = smul.addr %s243, 8
        %s245 = scalar_lea.vmem [#allocation7], %s244
        %s246 = sadd.s32 %s26, %s27
        %p247 = scmp.lt.s32.totalorder %s246, 0
        %s248 = scalar_select %p247, %s246, 0
        %s249 = smul.u32 4, %s248
        %s250 = ssub.s32 1, %s249
        %s251 = smul.u32 2, %s250
        %s252 = sadd.s32 %s26, %s27
        %p253 = scmp.lt.s32.totalorder %s252, 0
        %s254 = scalar_select %p253, %s252, 0
        %s255 = smul.u32 4, %s254
        %s256 = ssub.s32 1, %s255
        %s257 = smul.u32 2, %s256
        %p258 = scmp.eq.s32.totalorder %s27, 0
        // Predicated region
        $region37: #{tpu_custom_call.1} parent=27 // pred_check
          %p259 = pneg %p258
        $region38: #{tpu_custom_call.1} parent=27 // pred_check_branch
          %261 = sbr.rel (%p259) target = $region40
        $region39: #{tpu_custom_call.1} parent=27 // pred_region
          %262 = vst [vmem:[%s245] sm:$0xff] 0.0
        $region40: #{tpu_custom_call.1} parent=27 // pred_fallthru
          _
        %v263 = vld [vmem:[%s209] sm:$0xff]
        %v264 = vld [vmem:[%s219] sm:$0xff]
        %v265 = vsub.f32 %v263, %v264
        %v266 = vand.u32 2147483647, %v265
        %vm267 = vcmp.lt.f32.partialorder %v266, 2.0
        %v268 = vmul.f32 %v265, 10.0
        %v269 = vmul.f32 %v268, %v265
        %v270 = vadd.f32 %v266, 38.0
        %v271 = vsel %vm267, %v269, %v270
        %s272 = sadd.s32 %s26, %s27
        %s273 = smul.u32 %s272, 8
        %s274 = sadd.s32 %s273, 8
        %p275 = scmp.le.s32.totalorder %s274, 2
        // Predicated region
        $region41: #{tpu_custom_call.1} parent=27 // pred_check
          %p276 = pneg %p275
        $region42: #{tpu_custom_call.1} parent=27 // pred_check_branch
          %278 = sbr.rel (%p276) target = $region44
        $region43: #{tpu_custom_call.1} parent=27 // pred_region
          %v279 = vld [vmem:[%s245] sm:$0xff]
          %v280 = vadd.f32 %v279, %v271
          %281 = vst [vmem:[%s245] sm:$0xff] %v280
        $region44: #{tpu_custom_call.1} parent=27 // pred_fallthru
          _
        %p282 = scmp.gt.s32.totalorder %s274, 2
        // Predicated region
        $region45: #{tpu_custom_call.1} parent=27 // pred_check
          %p283 = pneg %p282
        $region46: #{tpu_custom_call.1} parent=27 // pred_check_branch
          %285 = sbr.rel (%p283) target = $region48
        $region47: #{tpu_custom_call.1} parent=27 // pred_region
          %v286 = vlaneseq
          %v287 = vshrl.u32 %v286, 7
          %v288 = vstv %s273
          %v289 = vadd.s32 %v288, %v287
          %v290 = vlaneseq
          %v291 = vand.u32 %v290, 127
          %vm292 = vcmp.lt.s32.totalorder %v289, 2
          %vm293 = vcmp.eq.s32.totalorder %v289, 2
          %vm294 = vcmp.lt.s32.totalorder %v291, 0
          %v295 = vsel %vm293, 1, 0
          %vm296 = vcmp.eq.s32.totalorder %v295, 1
          %v297 = vsel %vm294, 1, 0
          %vm298 = vcmp.eq.s32.totalorder %v297, 1
          %vm299 = vmand %vm296, %vm298
          %v300 = vsel %vm292, 1, 0
          %vm301 = vcmp.eq.s32.totalorder %v300, 1
          %vm302 = vmor %vm301, %vm299
          %v303 = vld [vmem:[%s245] sm:$0xff]
          %v304 = vsel %vm302, %v271, 0.0
          %v305 = vadd.f32 %v303, %v304
          %306 = vst [vmem:[%s245] sm:$0xff] %v305
        $region48: #{tpu_custom_call.1} parent=27 // pred_fallthru
          _
        %s307 = sand.u32 %s106, 1
        %s308 = scalar_lea.sflag [#allocation4], %s307
        %s309 = sand.u32 %s106, 1
        %s310 = smul.addr %s309, 8
        %s311 = scalar_lea.vmem [#allocation7], %s310
        // Predicated region
        $region49: #{tpu_custom_call.1} parent=27 // pred_check
          %p312 = pneg %p116
        $region50: #{tpu_custom_call.1} parent=27 // pred_check_branch
          %314 = sbr.rel (%p312) target = $region52
        $region51: #{tpu_custom_call.1} parent=27 // pred_region
          %316 = vsyncadd %s308, 0
          %s317 = smul.addr %s26, 8
          %s318 = scalar_lea.hbm %s2, %s317
          %s320 = sshll.u32 %s311, 4
          %s321 = int_to_ptr.vmem [resolvable:$true] %s320
          %s322 = sshll.u32 %s318, 4
          %s323 = int_to_ptr.hbm [resolvable:$true] %s322
          %325 = dma.vmem_to_hbm [thread:$0]  %s321, 128, %s323, %s308
        $region52: #{tpu_custom_call.1} parent=27 // pred_fallthru
          _
      $region28: #{tpu_custom_call.1} parent=5 // pred_fallthru
        _
      %p326 = scmp.le.s32.totalorder 2, %s17
      // Predicated region
      $region53: #{tpu_custom_call.1} parent=5 // pred_check
        %p327 = pneg %p326
      $region54: #{tpu_custom_call.1} parent=5 // pred_check_branch
        %329 = sbr.rel (%p327) target = $region56
      $region55: #{tpu_custom_call.1} parent=5 // pred_region
        %s330 = ssub.s32 %s17, 2
        // Predicated region
        $region57: #{tpu_custom_call.1} parent=55 // pred_check
          %p331 = pneg %p122
        $region58: #{tpu_custom_call.1} parent=55 // pred_check_branch
          %333 = sbr.rel (%p331) target = $region60
        $region59: #{tpu_custom_call.1} parent=55 // pred_region
          %s334 = sand.u32 %s107, 1
          %s335 = scalar_lea.sflag [#allocation4], %s334
          %s336 = sand.u32 %s107, 1
          %s337 = smul.addr %s336, 8
          %s338 = scalar_lea.vmem [#allocation7], %s337
          %340 = dma.done %s335, 128
        $region60: #{tpu_custom_call.1} parent=55 // pred_fallthru
          _
      $region56: #{tpu_custom_call.1} parent=5 // pred_fallthru
        _
    $region6: #{tpu_custom_call.1} parent=1 // loop_footer
      %s21 = sadd.s32 1, %s17
    $region7: #{tpu_custom_call.1} parent=1 // loop_footer_branch
      %16 = sbr.rel target = $region3
    $region8: #{tpu_custom_call.1} parent=1 // loop_exit
      _
    %341 = vsyncpa [#allocation3], 1
    %s342 = scalar_lea.sflag [#allocation3], 1
    %343 = vsyncpa %s342, 1
    %344 = vsyncpa [#allocation6], 1
    %s345 = scalar_lea.sflag [#allocation6], 1
    %346 = vsyncpa %s345, 1
    %347 = vsyncpa [#allocation4], 1
    %s348 = scalar_lea.sflag [#allocation4], 1
    %349 = vsyncpa %s348, 1

</llo_original>
